<compile_context>
chip_gen: v7x
topology: tpu7x:2x2x1
jax: 0.10.0
libtpu: 0.0.40
codegen_flags: <defaults>
</compile_context>

<pallas_src>
import functools

import jax
import jax.numpy as jnp
from jax.experimental import pallas as pl
from jax.experimental.pallas import tpu as pltpu


# ---------------------------------------------------------------------------
# Kernel bodies
# ---------------------------------------------------------------------------

def _read_pa(pa_ref, scalar_pa):
    if scalar_pa:
        return pa_ref[0]                        # f32 scalar from SMEM
    return pa_ref[...].astype(jnp.float32)      # (row_tile, 1) VMEM block


def _eprelu_det_kernel(x_ref, pa_ref, o_ref, *, scalar_pa):
    """k == 1 (eval mode or 'odd' call): plain PReLU."""
    xf = x_ref[...].astype(jnp.float32)
    pa = _read_pa(pa_ref, scalar_pa)
    o_ref[...] = jnp.where(xf < 0.0, pa * xf, xf).astype(o_ref.dtype)


def _eprelu_hostk_kernel(x_ref, pa_ref, k_ref, o_ref, *, scalar_pa):
    """Random k streamed in from HBM (non-TPU / interpret fallback)."""
    xf = x_ref[...].astype(jnp.float32)
    pa = _read_pa(pa_ref, scalar_pa)
    slope = jnp.where(xf < 0.0, pa, k_ref[...])
    o_ref[...] = (slope * xf).astype(o_ref.dtype)


def _eprelu_rng_kernel(seed_ref, x_ref, pa_ref, o_ref, *, eps, scalar_pa):
    """Random k generated on-chip with the TPU PRNG (mantissa bit-trick)."""
    i = pl.program_id(0)
    j = pl.program_id(1)
    block = i * pl.num_programs(1) + j
    # Decorrelate consecutive calls: stride the seed by a large prime so
    # call n, block b never collides with call n+1, block b' for small grids.
    pltpu.prng_seed(seed_ref[0] * 1000000007 + block)

    xf = x_ref[...].astype(jnp.float32)
    bits = pltpu.prng_random_bits(xf.shape)          # 32-bit random integers
    # Keep 23 mantissa bits, force exponent of 1.0 -> f32 uniform in [1, 2)
    # without any int->float convert.
    mant = (bits & 0x007FFFFF) | 0x3F800000
    u = pltpu.bitcast(mant, jnp.float32)             # u in [1, 2)
    k = (1.0 - 3.0 * eps) + (2.0 * eps) * u          # k in [1-eps, 1+eps)

    pa = _read_pa(pa_ref, scalar_pa)
    slope = jnp.where(xf < 0.0, pa, k)               # one select
    o_ref[...] = (slope * xf).astype(o_ref.dtype)    # one mul


# ---------------------------------------------------------------------------
# Tiling / wrapper
# ---------------------------------------------------------------------------

def _choose_tiling(rows, cols, dtype_bytes, *, target_block_bytes=4 << 20,
                   max_col_tile=2048):
    """Pick (row_tile, col_tile) for the (rows, cols) slab.

    * col_tile: full width when it fits (a full-dim block always satisfies the
      (8,128) rule even for ragged widths); otherwise a fixed 2048-lane tile
      (multiple of 128) with a masked ragged last block.  No divisor search,
      so DMAs never degenerate to 128-lane strips.
    * row_tile: multiple of 8 sized so one x/out block is ~4 MiB in native
      dtype; if everything fits in one row block and rows allow, split into
      two row blocks so the "parallel" axis can shard across v7x's 2 TCs.
    """
    col_tile = cols if cols <= max_col_tile else max_col_tile

    budget_rows = max(
        8, (target_block_bytes // max(1, col_tile * dtype_bytes)) // 8 * 8)
    if rows <= budget_rows:
        if rows >= 16:
            # Split into two row blocks (each a multiple of 8; last is masked).
            row_tile = max(8, (((rows + 1) // 2) + 7) // 8 * 8)
        else:
            row_tile = rows            # full dim -> tiling rule satisfied
    else:
        row_tile = budget_rows         # multiple of 8; ragged last block masked
    return row_tile, col_tile


def _pallas_eprelu(x2, pa_arg, scalar_pa, k2, seed, *, eps, use_tpu_rng,
                   row_tile, col_tile):
    rows, cols = x2.shape
    dtype_bytes = x2.dtype.itemsize
    grid = (pl.cdiv(rows, row_tile), pl.cdiv(cols, col_tile))
    out_shape = jax.ShapeDtypeStruct((rows, cols), x2.dtype)

    elems = rows * cols
    bytes_accessed = 2 * elems * dtype_bytes + int(pa_arg.size) * 4
    if k2 is not None:
        bytes_accessed += elems * 4
    cost = pl.CostEstimate(flops=3 * elems, transcendentals=0,
                           bytes_accessed=bytes_accessed)

    compiler_params = pltpu.CompilerParams(
        dimension_semantics=("parallel", "parallel"),
        vmem_limit_bytes=48 * 1024 * 1024,
    )

    x_spec = pl.BlockSpec((row_tile, col_tile), lambda i, j: (i, j))
    o_spec = pl.BlockSpec((row_tile, col_tile), lambda i, j: (i, j))
    if scalar_pa:
        pa_spec = pl.BlockSpec(memory_space=pltpu.MemorySpace.SMEM)
        pa_spec_s = pl.BlockSpec(memory_space=pltpu.MemorySpace.SMEM)
    else:
        # Column axis is the innermost grid axis, so this block index stays
        # (i, 0) across inner steps and its DMA is reused, not re-issued.
        pa_spec = pl.BlockSpec((row_tile, 1), lambda i, j: (i, 0))
        pa_spec_s = pl.BlockSpec((row_tile, 1), lambda i, j, s: (i, 0))

    if use_tpu_rng:
        grid_spec = pltpu.PrefetchScalarGridSpec(
            num_scalar_prefetch=1,
            grid=grid,
            in_specs=[
                pl.BlockSpec((row_tile, col_tile), lambda i, j, s: (i, j)),
                pa_spec_s,
            ],
            out_specs=pl.BlockSpec((row_tile, col_tile),
                                   lambda i, j, s: (i, j)),
        )
        return pl.pallas_call(
            functools.partial(_eprelu_rng_kernel, eps=float(eps),
                              scalar_pa=scalar_pa),
            out_shape=out_shape,
            grid_spec=grid_spec,
            compiler_params=compiler_params,
            cost_estimate=cost,
        )(jnp.asarray([seed], dtype=jnp.int32), x2, pa_arg)

    if k2 is not None:
        k_spec = pl.BlockSpec((row_tile, col_tile), lambda i, j: (i, j))
        return pl.pallas_call(
            functools.partial(_eprelu_hostk_kernel, scalar_pa=scalar_pa),
            out_shape=out_shape,
            grid=grid,
            in_specs=[x_spec, pa_spec, k_spec],
            out_specs=o_spec,
            compiler_params=compiler_params,
            cost_estimate=cost,
        )(x2, pa_arg, k2)

    return pl.pallas_call(
        functools.partial(_eprelu_det_kernel, scalar_pa=scalar_pa),
        out_shape=out_shape,
        grid=grid,
        in_specs=[x_spec, pa_spec],
        out_specs=o_spec,
        compiler_params=compiler_params,
        cost_estimate=cost,
    )(x2, pa_arg)


def eprelu(x, pa, seed, *, eps=0.4, training=True, odd=True):
    """EPReLU forward.  x: (N, C, H, W); pa: shape (1,) or (C, 1, 1)."""
    N, C, H, W = x.shape
    rows, cols = N * C, H * W
    dtype_bytes = jnp.dtype(x.dtype).itemsize

    row_tile, col_tile = _choose_tiling(rows, cols, dtype_bytes)

    # Contiguous reshape: free (no HBM copy), native dtype kept end-to-end.
    x2 = x.reshape(rows, cols)

    pa = jnp.asarray(pa, jnp.float32)
    if pa.size == 1:
        scalar_pa = True
        pa_arg = pa.reshape(1)                         # lives in SMEM
    else:
        scalar_pa = False
        pa_arg = jnp.tile(pa.reshape(-1, 1), (N, 1))   # (N*C, 1) per-row slope

    use_random = bool(training) and (not odd)
    on_tpu = jax.default_backend() == "tpu"

    k2 = None
    use_tpu_rng = False
    if use_random:
        if on_tpu:
            use_tpu_rng = True        # on-chip PRNG inside the kernel
        else:
            # Fallback for CPU / interpret mode, where pltpu.prng_* does not
            # lower: stream a precomputed per-element k through HBM.
            key = jax.random.PRNGKey(int(seed))
            k2 = jax.random.uniform(key, (rows, cols), jnp.float32,
                                    minval=1.0 - eps, maxval=1.0 + eps)

    out2 = _pallas_eprelu(x2, pa_arg, scalar_pa, k2, int(seed),
                          eps=float(eps), use_tpu_rng=use_tpu_rng,
                          row_tile=row_tile, col_tile=col_tile)
    return out2.reshape(N, C, H, W)


class EPReLUState:
    """Mirrors the PyTorch module's odd/even toggle and parameter init."""

    def __init__(self, num_parameters=1, pa_init=0.1, eps=0.4):
        self.num_parameters = num_parameters
        self.eps = eps
        self.odd = True
        self.training = True
        if num_parameters == 1:
            self.pa = jnp.full((1,), pa_init, dtype=jnp.float32)
        else:
            self.pa = jnp.full((num_parameters, 1, 1), pa_init,
                               dtype=jnp.float32)
        self._calls = 0

    def __call__(self, x):
        # The torch forward toggles `odd` first, then applies with the new value.
        self.odd = not self.odd
        self._calls += 1
        return eprelu(x, self.pa, seed=self._calls, eps=self.eps,
                      training=self.training, odd=self.odd)


if __name__ == "__main__":
    key = jax.random.PRNGKey(0)
    N, C, H, W = 2, 4, 16, 16
    x = jax.random.normal(key, (N, C, H, W), dtype=jnp.float32)

    # --- Per-channel pa (num_parameters = C) ---------------------------------
    mod = EPReLUState(num_parameters=C, pa_init=0.1, eps=0.4)
    out_random = jax.block_until_ready(mod(x))   # call 1: training & even -> random k
    out_det = jax.block_until_ready(mod(x))      # call 2: odd -> k = 1 (plain PReLU)
    assert out_random.shape == x.shape and out_det.shape == x.shape
    assert out_random.dtype == x.dtype

    pa_b = mod.pa.reshape(1, C, 1, 1)
    neg = x < 0

    ref_det = jnp.where(neg, pa_b * x, x)
    assert jnp.allclose(out_det, ref_det, atol=1e-6), "deterministic mismatch"

    # Random call: negative branch identical; positive branch scaled by
    # k in [1 - eps, 1 + eps].
    assert jnp.allclose(jnp.where(neg, out_random, 0.0),
                        jnp.where(neg, pa_b * x, 0.0), atol=1e-6)
    pos = jnp.logical_and(~neg, x != 0)
    ratio = jnp.where(pos, out_random / jnp.where(pos, x, 1.0), 1.0)
    assert bool(jnp.all(ratio >= 1.0 - mod.eps - 1e-5))
    assert bool(jnp.all(ratio <= 1.0 + mod.eps + 1e-5))

    # --- Scalar pa (num_parameters = 1): SMEM scalar path --------------------
    mod1 = EPReLUState(num_parameters=1, pa_init=0.1, eps=0.4)
    out_rand1 = jax.block_until_ready(mod1(x))          # random, scalar pa
    assert jnp.allclose(jnp.where(neg, out_rand1, 0.0),
                        jnp.where(neg, 0.1 * x, 0.0), atol=1e-6)
    mod1.training = False
    out_eval = jax.block_until_ready(mod1(x))           # eval -> k = 1
    assert jnp.allclose(out_eval, jnp.where(neg, 0.1 * x, x), atol=1e-6)

    # --- bf16 stays bf16 end-to-end (no wrapper upcast / extra HBM passes) ---
    xb = x.astype(jnp.bfloat16)
    mod_b = EPReLUState(num_parameters=C, pa_init=0.1, eps=0.4)
    mod_b.training = False
    out_b = jax.block_until_ready(mod_b(xb))
    assert out_b.dtype == jnp.bfloat16
    xbf = xb.astype(jnp.float32)
    ref_b = jnp.where(xbf < 0, pa_b * xbf, xbf).astype(jnp.bfloat16)
    assert jnp.allclose(out_b.astype(jnp.float32), ref_b.astype(jnp.float32),
                        atol=1e-2)

    print("KERNEL_OK")
</pallas_src>

<mosaic_0001>
module attributes {stable_mosaic.version = 11 : i64} {
  func.func @_eprelu_hostk_kernel(%arg0: i32, %arg1: i32, %arg2: memref<8x256xf32, #tpu.memory_space<vmem>>, %arg3: memref<8x1xf32, #tpu.memory_space<vmem>>, %arg4: memref<8x256xf32, #tpu.memory_space<vmem>>, %arg5: memref<8x256xf32, #tpu.memory_space<vmem>>) attributes {dimension_semantics = [#tpu.dimension_semantics<parallel>, #tpu.dimension_semantics<parallel>], iteration_bounds = array<i64: 1, 1>, scalar_prefetch = 0 : i64, scratch_operands = 0 : i64, tpu.core_type = #tpu.core_type<tc>, window_params = [{transform_indices = @transform_0, window_bounds = array<i64: 8, 256>}, {transform_indices = @transform_1, window_bounds = array<i64: 8, 1>}, {transform_indices = @transform_2, window_bounds = array<i64: 8, 256>}, {transform_indices = @transform_3, window_bounds = array<i64: 8, 256>}]} {
    %c0 = arith.constant 0 : index
    %c0_0 = arith.constant 0 : index
    %0 = vector.load %arg2[%c0, %c0_0] : memref<8x256xf32, #tpu.memory_space<vmem>>, vector<8x256xf32>
    %c0_1 = arith.constant 0 : index
    %c0_2 = arith.constant 0 : index
    %1 = vector.load %arg3[%c0_1, %c0_2] : memref<8x1xf32, #tpu.memory_space<vmem>>, vector<8x1xf32>
    %cst = arith.constant 0.000000e+00 : f32
    %2 = vector.broadcast %cst : f32 to vector<8x256xf32>
    %3 = arith.cmpf olt, %0, %2 : vector<8x256xf32>
    %c0_3 = arith.constant 0 : index
    %c0_4 = arith.constant 0 : index
    %4 = vector.load %arg4[%c0_3, %c0_4] : memref<8x256xf32, #tpu.memory_space<vmem>>, vector<8x256xf32>
    %5 = vector.shape_cast %1 : vector<8x1xf32> to vector<8x1xf32>
    %6 = vector.broadcast %5 : vector<8x1xf32> to vector<8x256xf32>
    %7 = arith.select %3, %6, %4 : vector<8x256xi1>, vector<8x256xf32>
    %8 = arith.mulf %7, %0 : vector<8x256xf32>
    %c0_5 = arith.constant 0 : index
    %c0_6 = arith.constant 0 : index
    %9 = vector.load %arg5[%c0_5, %c0_6] : memref<8x256xf32, #tpu.memory_space<vmem>>, vector<8x256xf32>
    tpu.vector_store %arg5[%c0_5, %c0_6], %8 {strides = array<i32>} : memref<8x256xf32, #tpu.memory_space<vmem>>, vector<8x256xf32>,
    return
  }
  func.func @transform_0(%arg0: i32, %arg1: i32) -> (i32, i32) {
    %c0_i32 = arith.constant 0 : i32
    return %arg0, %arg1 : i32, i32
  }
  func.func @transform_1(%arg0: i32, %arg1: i32) -> (i32, i32) {
    %c0_i32 = arith.constant 0 : i32
    %c0_i32_0 = arith.constant 0 : i32
    return %arg0, %c0_i32 : i32, i32
  }
  func.func @transform_2(%arg0: i32, %arg1: i32) -> (i32, i32) {
    %c0_i32 = arith.constant 0 : i32
    return %arg0, %arg1 : i32, i32
  }
  func.func @transform_3(%arg0: i32, %arg1: i32) -> (i32, i32) {
    %c0_i32 = arith.constant 0 : i32
    return %arg0, %arg1 : i32, i32
  }
}

</mosaic_0001>

<llo_original>
// kernel: tpu_custom_call.1
$region0: #{tpu_custom_call.1}
  #allocation0 [shape = 'u32[]', space=smem, size = 0x4, offset = 0x4, fixed_abs, tag = 'smem constant byte address 0x4 - core index']
  #allocation1 [shape = 'u32[144,128]{1,0:T(1,128)}', space=vmem, size = 0x12000, scoped, tag = 'internal scratch']
  %s0 = inlined_call_operand.hbm [shape: f32[8,256], index: 0, kind: input, shape index: {}]
  %s1 = inlined_call_operand.vmem [shape: f32[8,1], index: 1, kind: input, shape index: {}]
  %s2 = inlined_call_operand.vmem [shape: f32[8,256], index: 2, kind: input, shape index: {}]
  %s3 = inlined_call_operand.hbm [shape: f32[8,256], index: 3, kind: output, shape index: {}]
  %s4 = sld [smem:[#allocation0]]
  $region26: #{tpu_custom_call.1} parent=0
    _
  %s6 = ssub.s32 1, %s4
  %s7 = scalar_select 0, %s6, %s4
  $region1: #{tpu_custom_call.1} parent=0
    #allocation2 [shape = 'u8[8192]{0}', space=vmem, size = 0x2000, scoped, tag = 'input window, operand 0, single buffered']
    #allocation3 [shape = 's32[1]{0}', space=sflag, size = 0x4, scoped, tag = 'scoped memory for tpu_custom_call.1']
    #allocation4 [shape = 's32[1]{0}', space=sflag, size = 0x4, scoped, tag = 'scoped memory for tpu_custom_call.1']
    #allocation5 [shape = 'u8[8192]{0}', space=vmem, size = 0x2000, scoped, tag = 'output window, operand 0, single buffered']
    %8 = vsyncpa [#allocation3], 0
    %9 = vsyncpa [#allocation4], 0
    // Predicated region
    $region2: #{tpu_custom_call.1} parent=1 // pred_check
      _
    $region3: #{tpu_custom_call.1} parent=1 // pred_check_branch
      %11 = sbr.rel (0) target = $region5
    $region4: #{tpu_custom_call.1} parent=1 // pred_region
      %s13 = ssub.s32 256, 256
      %14 = vsyncadd [#allocation3], %s13
      %s16 = sshll.u32 [#allocation2], 4
      %s17 = int_to_ptr.vmem [resolvable:$true] %s16
      %19 = dma.hbm_to_vmem [thread:$0]  %s0, 256, %s17, [#allocation3]
    $region5: #{tpu_custom_call.1} parent=1 // pred_fallthru
      _
    // Predicated region
    $region6: #{tpu_custom_call.1} parent=1 // pred_check
      _
    $region7: #{tpu_custom_call.1} parent=1 // pred_check_branch
      %21 = sbr.rel (0) target = $region9
    $region8: #{tpu_custom_call.1} parent=1 // pred_region
      _
    $region9: #{tpu_custom_call.1} parent=1 // pred_fallthru
      _
    // Predicated region
    $region10: #{tpu_custom_call.1} parent=1 // pred_check
      _
    $region11: #{tpu_custom_call.1} parent=1 // pred_check_branch
      %23 = sbr.rel (0) target = $region13
    $region12: #{tpu_custom_call.1} parent=1 // pred_region
      _
    $region13: #{tpu_custom_call.1} parent=1 // pred_fallthru
      _
    // Predicated region
    $region14: #{tpu_custom_call.1} parent=1 // pred_check
      _
    $region15: #{tpu_custom_call.1} parent=1 // pred_check_branch
      %25 = sbr.rel (0) target = $region17
    $region16: #{tpu_custom_call.1} parent=1 // pred_region
      %26 = dma.done [#allocation3], 256
    $region17: #{tpu_custom_call.1} parent=1 // pred_fallthru
      _
    %v27 = vld [vmem:[#allocation2] sm:$0xff]
    %v28 = vld [vmem:[#allocation2 + $0x8] sm:$0xff]
    %v29 = vld [vmem:[%s1] sm:$0xff]
    %vm30 = vcmp.lt.f32.partialorder %v27, 0.0
    %vm31 = vcmp.lt.f32.partialorder %v28, 0.0
    %v32 = vld [vmem:[%s2] sm:$0xff]
    %v33 = vld [vmem:[%s2 + $0x8] sm:$0xff]
    %35 = vset.pattern.permute.xlu0 0
    %36 = vperm.xlu0 %35, %v29
    %v37 = vpop.permute.xlu0 %36
    %v39 = vsel %vm30, %v37, %v32
    %v40 = vsel %vm31, %v37, %v33
    %v41 = vmul.f32 %v39, %v27
    %v42 = vmul.f32 %v40, %v28
    %43 = vst [vmem:[#allocation5] sm:$0xff] %v41
    %44 = vst [vmem:[#allocation5 + $0x8] sm:$0xff] %v42
    // Predicated region
    $region18: #{tpu_custom_call.1} parent=1 // pred_check
      _
    $region19: #{tpu_custom_call.1} parent=1 // pred_check_branch
      %46 = sbr.rel (0) target = $region21
    $region20: #{tpu_custom_call.1} parent=1 // pred_region
      %s48 = ssub.s32 256, 256
      %49 = vsyncadd [#allocation4], %s48
      %s51 = sshll.u32 [#allocation5], 4
      %s52 = int_to_ptr.vmem [resolvable:$true] %s51
      %54 = dma.vmem_to_hbm [thread:$0]  %s52, 256, %s3, [#allocation4]
    $region21: #{tpu_custom_call.1} parent=1 // pred_fallthru
      _
    // Predicated region
    $region22: #{tpu_custom_call.1} parent=1 // pred_check
      _
    $region23: #{tpu_custom_call.1} parent=1 // pred_check_branch
      %56 = sbr.rel (0) target = $region25
    $region24: #{tpu_custom_call.1} parent=1 // pred_region
      %57 = dma.done [#allocation4], 256
    $region25: #{tpu_custom_call.1} parent=1 // pred_fallthru
      _
    %58 = vsyncpa [#allocation3], 1
    %59 = vsyncpa [#allocation4], 1

</llo_original>
